<compile_context>
chip_gen: v5e
topology: v5e:2x2
jax: 0.10.0
libtpu: 0.0.40
codegen_flags: <defaults>
</compile_context>

<pallas_src>
import functools

import jax
import jax.numpy as jnp
from jax.experimental import pallas as pl
from jax.experimental.pallas import tpu as pltpu


def _cdiv(a, b):
    return (a + b - 1) // b


def _round_up(x, m):
    return ((x + m - 1) // m) * m


def _pick_block_bytes():
    """Per-generation DMA block size per input (bytes)."""
    try:
        info = pltpu.get_tpu_info()
        vmem = getattr(info, "vmem_capacity_bytes", None)
        # v7x-class: 64 MiB VMEM / ~3.2 TB/s HBM -> bigger blocks hide the
        # ~0.35us per-step overhead.  v5e/v6e (128 MiB VMEM) are already at the
        # ~85% roofline plateau at 2-4 MiB blocks.
        if vmem is not None and vmem <= 96 * (1 << 20):
            return 8 << 20
    except Exception:
        pass
    return 4 << 20


def _dice_sums_kernel(logits_ref, targets_ref, s_ref, st_ref, t_ref, *,
                      rows_tile, sub_rows, k_inner, valid_rows, needs_mask):
    """Accumulate per-(sample, p) partial sums over row chunks.

    logits_ref / targets_ref : (rows_tile, 128) VMEM tiles (native dtype).
    s_ref / st_ref / t_ref   : (8, 128) f32 accumulators, resident across the
        row-chunk ("arbitrary") grid axis:
          s_ref  += sum tanh(0.5 * logits)        (masked slots contribute -1)
          st_ref += sum tanh(0.5 * logits) * tgt  (masked slots contribute 0)
          t_ref  += sum tgt                       (masked slots contribute 0)
    The wrapper reconstructs sigmoid-based sums exactly from these.
    """
    p = pl.program_id(1)
    k = pl.program_id(2)

    @pl.when(k == 0)
    def _():
        s_ref[...] = jnp.zeros_like(s_ref)
        st_ref[...] = jnp.zeros_like(st_ref)
        t_ref[...] = jnp.zeros_like(t_ref)

    # Virtual (unclamped) row-chunk index; the input index_map may clamp the
    # block it loads, but the mask below is driven by this virtual index.
    base_row = (p * k_inner + k) * rows_tile

    n_sub = rows_tile // sub_rows
    g = sub_rows // 8

    if needs_mask:
        row_iota = jax.lax.broadcasted_iota(jnp.int32, (sub_rows, 1), 0)  # hoisted

    def body(i, carry):
        acc_s, acc_st, acc_t = carry
        off = pl.multiple_of(i * sub_rows, sub_rows)
        lg = logits_ref[pl.ds(off, sub_rows), :].astype(jnp.float32)
        tg = targets_ref[pl.ds(off, sub_rows), :].astype(jnp.float32)
        s = jnp.tanh(0.5 * lg)                       # sigmoid(x) = 0.5*(s+1)
        if needs_mask:
            m = (base_row + off + row_iota) < valid_rows
            s = jnp.where(m, s, -1.0)                # -1 == sigmoid(-inf) in tanh basis
            tg = jnp.where(m, tg, 0.0)
        st = s * tg
        if g == 1:
            acc_s = acc_s + s
            acc_st = acc_st + st
            acc_t = acc_t + tg
        else:
            # (sub_rows,128) -> (g,8,128): sublane/lane-aligned view; sum over the
            # leading axis is pure vreg-wise VPU adds (no XLU relayout).
            acc_s = acc_s + s.reshape(g, 8, 128).sum(axis=0)
            acc_st = acc_st + st.reshape(g, 8, 128).sum(axis=0)
            acc_t = acc_t + tg.reshape(g, 8, 128).sum(axis=0)
        return acc_s, acc_st, acc_t

    z = jnp.zeros((8, 128), jnp.float32)
    unroll = 4 if n_sub % 4 == 0 else (2 if n_sub % 2 == 0 else 1)
    acc_s, acc_st, acc_t = jax.lax.fori_loop(0, n_sub, body, (z, z, z), unroll=unroll)

    s_ref[...] += acc_s
    st_ref[...] += acc_st
    t_ref[...] += acc_t


def _dice_partial_sums(logits3, targets3, *, rows_tile, p_split, k_inner,
                       valid_rows, needs_mask, vmem_limit_bytes, cost):
    """logits3/targets3: (N, r_arr, 128) in native dtype."""
    n, r_arr, _ = logits3.shape
    nblocks = _cdiv(r_arr, rows_tile)

    def in_index(b, p, k):
        j = p * k_inner + k
        # Clamp virtual chunks past the last real block; the kernel masks them
        # out entirely, so the loaded data never contributes.
        return (b, jnp.minimum(j, nblocks - 1), 0)

    in_spec = pl.BlockSpec((None, rows_tile, 128), in_index)
    out_spec = pl.BlockSpec((None, None, 8, 128), lambda b, p, k: (b, p, 0, 0))
    out_shape = [jax.ShapeDtypeStruct((n, p_split, 8, 128), jnp.float32)
                 for _ in range(3)]

    sub_rows = 32 if rows_tile % 32 == 0 else 8
    kernel = functools.partial(
        _dice_sums_kernel,
        rows_tile=rows_tile, sub_rows=sub_rows, k_inner=k_inner,
        valid_rows=valid_rows, needs_mask=needs_mask)

    return pl.pallas_call(
        kernel,
        out_shape=out_shape,
        grid_spec=pltpu.PrefetchScalarGridSpec(
            num_scalar_prefetch=0,
            grid=(n, p_split, k_inner),
            in_specs=[in_spec, in_spec],
            out_specs=[out_spec, out_spec, out_spec],
        ),
        compiler_params=pltpu.CompilerParams(
            # sample axis and row-split axis shard across cores (v7x megacore);
            # the row-chunk reduction axis is last and serial.
            dimension_semantics=("parallel", "parallel", "arbitrary"),
            vmem_limit_bytes=vmem_limit_bytes,
        ),
        cost_estimate=cost,
    )(logits3, targets3)


def logcosh_dice_loss(logits, targets, smooth=1.0, target_block_bytes=None):
    """Equivalent of logcoshDiceLoss().forward(logits, targets).

    logits, targets: any shape with a leading batch dim (e.g. NCHW).
    Returns a scalar float32.
    """
    num = logits.shape[0]
    logits_flat = logits.reshape(num, -1)     # native dtype, no up-cast copy
    targets_flat = targets.reshape(num, -1)
    f = logits_flat.shape[1]

    l_item = jnp.dtype(logits_flat.dtype).itemsize
    t_item = jnp.dtype(targets_flat.dtype).itemsize

    if target_block_bytes is None:
        target_block_bytes = _pick_block_bytes()

    # --- tiling: lane-dense rows of 128; balanced row chunks of <= max_rows ---
    r = _cdiv(f, 128)
    bytes_per_row = 128 * max(l_item, t_item)
    max_rows = max(32, (target_block_bytes // bytes_per_row) // 32 * 32)

    if r <= max_rows:
        # whole sample in one block; pad rows to a multiple of 8 (tiny).
        rows_tile = max(8, _round_up(r, 8))
        r_arr = rows_tile
        p_split, k_inner = 1, 1
    else:
        # streaming path: split the row chunks 2-way for v7x's two TensorCores
        # (harmless elsewhere) and balance chunk sizes so there is at most one
        # partial (masked) chunk -- no round_up(r, rows_tile) blow-up.
        p_split = 2
        k_total = _round_up(_cdiv(r, max_rows), p_split)
        k_inner = k_total // p_split
        rows_tile = _round_up(_cdiv(r, k_total), 32)   # multiple of 32: dense bf16/int8 tiles
        r_arr = r

    k_total = p_split * k_inner
    needs_mask = (k_total * rows_tile) != r_arr

    # --- lane-alignment pad only (sigmoid(-1e4) == 0 exactly, target pad 0) ---
    f_arr = r_arr * 128
    if f_arr != f:
        logits_flat = jnp.pad(
            logits_flat, ((0, 0), (0, f_arr - f)), constant_values=-1e4)
        targets_flat = jnp.pad(targets_flat, ((0, 0), (0, f_arr - f)))

    logits3 = logits_flat.reshape(num, r_arr, 128)
    targets3 = targets_flat.reshape(num, r_arr, 128)

    # --- VMEM budget: double-buffered inputs + tiny accumulators + margin.
    # The in-kernel working set is now a few vregs, so this accounting is real.
    in_block_bytes = rows_tile * 128 * (l_item + t_item)
    needed = 2 * in_block_bytes + 2 * 3 * 8 * 128 * 4
    vmem_limit = int(min(max(needed + (2 << 20), 16 << 20), 56 << 20))

    total_elems = num * k_total * rows_tile * 128
    cost = pl.CostEstimate(
        flops=6 * total_elems,
        transcendentals=total_elems,
        bytes_accessed=int(num * r_arr * 128 * (l_item + t_item)
                           + 3 * num * p_split * 8 * 128 * 4),
    )

    s_p, st_p, t_p = _dice_partial_sums(
        logits3, targets3,
        rows_tile=rows_tile, p_split=p_split, k_inner=k_inner,
        valid_rows=r_arr, needs_mask=needs_mask,
        vmem_limit_bytes=vmem_limit, cost=cost)

    # per-sample totals (tiny glue) and exact reconstruction of the sigmoid sums:
    #   probs = 0.5*(s+1), masked/padded slots carry s=-1, t=0.
    s1 = s_p.sum(axis=(1, 2, 3))
    s2 = st_p.sum(axis=(1, 2, 3))
    s3 = t_p.sum(axis=(1, 2, 3))
    total_slots = float(k_total * rows_tile * 128)

    m1_sum = 0.5 * (s1 + total_slots)        # sum(sigmoid(logits)) over valid elems
    intersection = 0.5 * (s2 + s3)           # sum(sigmoid(logits) * targets)
    m2_sum = s3                              # sum(targets)

    score = 2.0 * (intersection + smooth) / (m1_sum + m2_sum + smooth)
    x = 1.0 - score.sum() / num
    # log-cosh (x is bounded; the direct form matches the PyTorch module)
    return jnp.log((jnp.exp(x) + jnp.exp(-x)) / 2.0)


def _reference_loss(logits, targets, smooth=1.0):
    n = logits.shape[0]
    probs = jax.nn.sigmoid(logits.astype(jnp.float32)).reshape(n, -1)
    t = targets.astype(jnp.float32).reshape(n, -1)
    score = 2.0 * ((probs * t).sum(1) + smooth) / (probs.sum(1) + t.sum(1) + smooth)
    x = 1.0 - score.sum() / n
    return jnp.log((jnp.exp(x) + jnp.exp(-x)) / 2.0)


if __name__ == "__main__":
    key = jax.random.PRNGKey(0)
    k1, k2, k3, k4, k5, k6, k7, k8 = jax.random.split(key, 8)

    # --- test 1: 128-aligned features, f32 inputs (NCHW segmentation-style) ---
    N, C, H, W = 2, 4, 16, 16
    logits = jax.random.normal(k1, (N, C, H, W), dtype=jnp.float32)
    targets = (jax.random.uniform(k2, (N, C, H, W)) > 0.5).astype(jnp.float32)
    loss = jax.block_until_ready(logcosh_dice_loss(logits, targets))
    ref = _reference_loss(logits, targets)
    assert jnp.allclose(loss, ref, atol=2e-5, rtol=1e-5), (loss, ref)

    # --- test 2: ragged feature count + native bf16 logits / int8 targets ---
    logits2 = jax.random.normal(k3, (2, 3, 7, 11), dtype=jnp.bfloat16)
    targets2 = (jax.random.uniform(k4, (2, 3, 7, 11)) > 0.5).astype(jnp.int8)
    loss2 = jax.block_until_ready(logcosh_dice_loss(logits2, targets2))
    ref2 = _reference_loss(logits2, targets2)
    assert jnp.allclose(loss2, ref2, atol=2e-5, rtol=1e-5), (loss2, ref2)

    # --- test 3: multi-chunk streaming path (in-kernel tail mask + P=2 split) ---
    logits3 = jax.random.normal(k5, (2, 4, 40, 40), dtype=jnp.float32)
    targets3 = (jax.random.uniform(k6, (2, 4, 40, 40)) > 0.5).astype(jnp.float32)
    loss3 = jax.block_until_ready(
        logcosh_dice_loss(logits3, targets3, target_block_bytes=32 * 128 * 4))
    ref3 = _reference_loss(logits3, targets3)
    assert jnp.allclose(loss3, ref3, atol=2e-5, rtol=1e-5), (loss3, ref3)

    # --- test 4: clamped virtual chunks (k_total > real block count) ---
    logits4 = jax.random.normal(k7, (2, 70, 128), dtype=jnp.float32)
    targets4 = (jax.random.uniform(k8, (2, 70, 128)) > 0.5).astype(jnp.float32)
    loss4 = jax.block_until_ready(
        logcosh_dice_loss(logits4, targets4, target_block_bytes=32 * 128 * 4))
    ref4 = _reference_loss(logits4, targets4)
    assert jnp.allclose(loss4, ref4, atol=2e-5, rtol=1e-5), (loss4, ref4)

    print("KERNEL_OK")
</pallas_src>

<mosaic_0001>
module attributes {stable_mosaic.version = 11 : i64} {
  func.func @_dice_sums_kernel(%arg0: i32, %arg1: i32, %arg2: i32, %arg3: memref<1x8x128xf32, #tpu.memory_space<vmem>>, %arg4: memref<1x8x128xf32, #tpu.memory_space<vmem>>, %arg5: memref<1x1x8x128xf32, #tpu.memory_space<vmem>>, %arg6: memref<1x1x8x128xf32, #tpu.memory_space<vmem>>, %arg7: memref<1x1x8x128xf32, #tpu.memory_space<vmem>>) attributes {dimension_semantics = [#tpu.dimension_semantics<parallel>, #tpu.dimension_semantics<parallel>, #tpu.dimension_semantics<arbitrary>], iteration_bounds = array<i64: 2, 1, 1>, scalar_prefetch = 0 : i64, scratch_operands = 0 : i64, tpu.core_type = #tpu.core_type<tc>, window_params = [{transform_indices = @transform_0, window_bounds = array<i64: 1, 8, 128>}, {transform_indices = @transform_1, window_bounds = array<i64: 1, 8, 128>}, {transform_indices = @transform_2, window_bounds = array<i64: 1, 1, 8, 128>}, {transform_indices = @transform_3, window_bounds = array<i64: 1, 1, 8, 128>}, {transform_indices = @transform_4, window_bounds = array<i64: 1, 1, 8, 128>}]} {
    %c0_i32 = arith.constant 0 : i32
    %0 = arith.cmpi eq, %arg2, %c0_i32 : i32
    %1 = arith.extui %0 : i1 to i32
    %c0_i32_0 = arith.constant 0 : i32
    %2 = arith.cmpi ne, %1, %c0_i32_0 : i32
    scf.if %2 {
      %cst_30 = arith.constant 0.000000e+00 : f32
      %37 = vector.broadcast %cst_30 : f32 to vector<8x128xf32>
      %c0_31 = arith.constant 0 : index
      %c0_32 = arith.constant 0 : index
      %c0_33 = arith.constant 0 : index
      %c0_34 = arith.constant 0 : index
      %38 = vector.load %arg5[%c0_31, %c0_32, %c0_33, %c0_34] : memref<1x1x8x128xf32, #tpu.memory_space<vmem>>, vector<1x1x8x128xf32>
      %39 = vector.shape_cast %38 : vector<1x1x8x128xf32> to vector<8x128xf32>
      %40 = vector.shape_cast %37 : vector<8x128xf32> to vector<1x1x8x128xf32>
      tpu.vector_store %arg5[%c0_31, %c0_32, %c0_33, %c0_34], %40 {strides = array<i32>} : memref<1x1x8x128xf32, #tpu.memory_space<vmem>>, vector<1x1x8x128xf32>,
      %cst_35 = arith.constant 0.000000e+00 : f32
      %41 = vector.broadcast %cst_35 : f32 to vector<8x128xf32>
      %c0_36 = arith.constant 0 : index
      %c0_37 = arith.constant 0 : index
      %c0_38 = arith.constant 0 : index
      %c0_39 = arith.constant 0 : index
      %42 = vector.load %arg6[%c0_36, %c0_37, %c0_38, %c0_39] : memref<1x1x8x128xf32, #tpu.memory_space<vmem>>, vector<1x1x8x128xf32>
      %43 = vector.shape_cast %42 : vector<1x1x8x128xf32> to vector<8x128xf32>
      %44 = vector.shape_cast %41 : vector<8x128xf32> to vector<1x1x8x128xf32>
      tpu.vector_store %arg6[%c0_36, %c0_37, %c0_38, %c0_39], %44 {strides = array<i32>} : memref<1x1x8x128xf32, #tpu.memory_space<vmem>>, vector<1x1x8x128xf32>,
      %cst_40 = arith.constant 0.000000e+00 : f32
      %45 = vector.broadcast %cst_40 : f32 to vector<8x128xf32>
      %c0_41 = arith.constant 0 : index
      %c0_42 = arith.constant 0 : index
      %c0_43 = arith.constant 0 : index
      %c0_44 = arith.constant 0 : index
      %46 = vector.load %arg7[%c0_41, %c0_42, %c0_43, %c0_44] : memref<1x1x8x128xf32, #tpu.memory_space<vmem>>, vector<1x1x8x128xf32>
      %47 = vector.shape_cast %46 : vector<1x1x8x128xf32> to vector<8x128xf32>
      %48 = vector.shape_cast %45 : vector<8x128xf32> to vector<1x1x8x128xf32>
      tpu.vector_store %arg7[%c0_41, %c0_42, %c0_43, %c0_44], %48 {strides = array<i32>} : memref<1x1x8x128xf32, #tpu.memory_space<vmem>>, vector<1x1x8x128xf32>,
    } else {
    }
    %cst = arith.constant 0.000000e+00 : f32
    %3 = vector.broadcast %cst : f32 to vector<8x128xf32>
    %c0_i32_1 = arith.constant 0 : i32
    %c8_i32 = arith.constant 8 : i32
    %4 = arith.muli %c0_i32_1, %c8_i32 : i32
    %5 = tpu.assume_multiple %4, 8 : i32
    %c0 = arith.constant 0 : index
    %6 = arith.index_cast %5 : i32 to index
    %c0_2 = arith.constant 0 : index
    %7 = vector.load %arg3[%c0, %6, %c0_2] : memref<1x8x128xf32, #tpu.memory_space<vmem>>, vector<1x8x128xf32>
    %8 = vector.shape_cast %7 : vector<1x8x128xf32> to vector<8x128xf32>
    %c0_3 = arith.constant 0 : index
    %9 = arith.index_cast %5 : i32 to index
    %c0_4 = arith.constant 0 : index
    %10 = vector.load %arg4[%c0_3, %9, %c0_4] : memref<1x8x128xf32, #tpu.memory_space<vmem>>, vector<1x8x128xf32>
    %11 = vector.shape_cast %10 : vector<1x8x128xf32> to vector<8x128xf32>
    %cst_5 = arith.constant 5.000000e-01 : f32
    %12 = vector.broadcast %cst_5 : f32 to vector<8x128xf32>
    %13 = arith.mulf %12, %8 : vector<8x128xf32>
    %14 = math.tanh %13 : vector<8x128xf32>
    %15 = arith.mulf %14, %11 : vector<8x128xf32>
    %16 = arith.addf %3, %14 : vector<8x128xf32>
    %17 = arith.addf %3, %15 : vector<8x128xf32>
    %18 = arith.addf %3, %11 : vector<8x128xf32>
    %c1_i32 = arith.constant 1 : i32
    %c0_6 = arith.constant 0 : index
    %c0_7 = arith.constant 0 : index
    %c0_8 = arith.constant 0 : index
    %c0_9 = arith.constant 0 : index
    %19 = vector.load %arg5[%c0_6, %c0_7, %c0_8, %c0_9] : memref<1x1x8x128xf32, #tpu.memory_space<vmem>>, vector<1x1x8x128xf32>
    %20 = vector.shape_cast %19 : vector<1x1x8x128xf32> to vector<8x128xf32>
    %21 = arith.addf %20, %16 : vector<8x128xf32>
    %c0_10 = arith.constant 0 : index
    %c0_11 = arith.constant 0 : index
    %c0_12 = arith.constant 0 : index
    %c0_13 = arith.constant 0 : index
    %22 = vector.load %arg5[%c0_10, %c0_11, %c0_12, %c0_13] : memref<1x1x8x128xf32, #tpu.memory_space<vmem>>, vector<1x1x8x128xf32>
    %23 = vector.shape_cast %22 : vector<1x1x8x128xf32> to vector<8x128xf32>
    %24 = vector.shape_cast %21 : vector<8x128xf32> to vector<1x1x8x128xf32>
    tpu.vector_store %arg5[%c0_10, %c0_11, %c0_12, %c0_13], %24 {strides = array<i32>} : memref<1x1x8x128xf32, #tpu.memory_space<vmem>>, vector<1x1x8x128xf32>,
    %c0_14 = arith.constant 0 : index
    %c0_15 = arith.constant 0 : index
    %c0_16 = arith.constant 0 : index
    %c0_17 = arith.constant 0 : index
    %25 = vector.load %arg6[%c0_14, %c0_15, %c0_16, %c0_17] : memref<1x1x8x128xf32, #tpu.memory_space<vmem>>, vector<1x1x8x128xf32>
    %26 = vector.shape_cast %25 : vector<1x1x8x128xf32> to vector<8x128xf32>
    %27 = arith.addf %26, %17 : vector<8x128xf32>
    %c0_18 = arith.constant 0 : index
    %c0_19 = arith.constant 0 : index
    %c0_20 = arith.constant 0 : index
    %c0_21 = arith.constant 0 : index
    %28 = vector.load %arg6[%c0_18, %c0_19, %c0_20, %c0_21] : memref<1x1x8x128xf32, #tpu.memory_space<vmem>>, vector<1x1x8x128xf32>
    %29 = vector.shape_cast %28 : vector<1x1x8x128xf32> to vector<8x128xf32>
    %30 = vector.shape_cast %27 : vector<8x128xf32> to vector<1x1x8x128xf32>
    tpu.vector_store %arg6[%c0_18, %c0_19, %c0_20, %c0_21], %30 {strides = array<i32>} : memref<1x1x8x128xf32, #tpu.memory_space<vmem>>, vector<1x1x8x128xf32>,
    %c0_22 = arith.constant 0 : index
    %c0_23 = arith.constant 0 : index
    %c0_24 = arith.constant 0 : index
    %c0_25 = arith.constant 0 : index
    %31 = vector.load %arg7[%c0_22, %c0_23, %c0_24, %c0_25] : memref<1x1x8x128xf32, #tpu.memory_space<vmem>>, vector<1x1x8x128xf32>
    %32 = vector.shape_cast %31 : vector<1x1x8x128xf32> to vector<8x128xf32>
    %33 = arith.addf %32, %18 : vector<8x128xf32>
    %c0_26 = arith.constant 0 : index
    %c0_27 = arith.constant 0 : index
    %c0_28 = arith.constant 0 : index
    %c0_29 = arith.constant 0 : index
    %34 = vector.load %arg7[%c0_26, %c0_27, %c0_28, %c0_29] : memref<1x1x8x128xf32, #tpu.memory_space<vmem>>, vector<1x1x8x128xf32>
    %35 = vector.shape_cast %34 : vector<1x1x8x128xf32> to vector<8x128xf32>
    %36 = vector.shape_cast %33 : vector<8x128xf32> to vector<1x1x8x128xf32>
    tpu.vector_store %arg7[%c0_26, %c0_27, %c0_28, %c0_29], %36 {strides = array<i32>} : memref<1x1x8x128xf32, #tpu.memory_space<vmem>>, vector<1x1x8x128xf32>,
    return
  }
  func.func @transform_0(%arg0: i32, %arg1: i32, %arg2: i32) -> (i32, i32, i32) {
    %c1_i32 = arith.constant 1 : i32
    %0 = arith.muli %arg1, %c1_i32 : i32
    %1 = arith.addi %0, %arg2 : i32
    %c0_i32 = arith.constant 0 : i32
    %2 = arith.minsi %1, %c0_i32 : i32
    %c0_i32_0 = arith.constant 0 : i32
    %c0_i32_1 = arith.constant 0 : i32
    return %arg0, %2, %c0_i32_0 : i32, i32, i32
  }
  func.func @transform_1(%arg0: i32, %arg1: i32, %arg2: i32) -> (i32, i32, i32) {
    %c1_i32 = arith.constant 1 : i32
    %0 = arith.muli %arg1, %c1_i32 : i32
    %1 = arith.addi %0, %arg2 : i32
    %c0_i32 = arith.constant 0 : i32
    %2 = arith.minsi %1, %c0_i32 : i32
    %c0_i32_0 = arith.constant 0 : i32
    %c0_i32_1 = arith.constant 0 : i32
    return %arg0, %2, %c0_i32_0 : i32, i32, i32
  }
  func.func @transform_2(%arg0: i32, %arg1: i32, %arg2: i32) -> (i32, i32, i32, i32) {
    %c0_i32 = arith.constant 0 : i32
    %c0_i32_0 = arith.constant 0 : i32
    %c0_i32_1 = arith.constant 0 : i32
    return %arg0, %arg1, %c0_i32, %c0_i32_0 : i32, i32, i32, i32
  }
  func.func @transform_3(%arg0: i32, %arg1: i32, %arg2: i32) -> (i32, i32, i32, i32) {
    %c0_i32 = arith.constant 0 : i32
    %c0_i32_0 = arith.constant 0 : i32
    %c0_i32_1 = arith.constant 0 : i32
    return %arg0, %arg1, %c0_i32, %c0_i32_0 : i32, i32, i32, i32
  }
  func.func @transform_4(%arg0: i32, %arg1: i32, %arg2: i32) -> (i32, i32, i32, i32) {
    %c0_i32 = arith.constant 0 : i32
    %c0_i32_0 = arith.constant 0 : i32
    %c0_i32_1 = arith.constant 0 : i32
    return %arg0, %arg1, %c0_i32, %c0_i32_0 : i32, i32, i32, i32
  }
}

</mosaic_0001>

<llo_original>
// kernel: tpu_custom_call.1
$region0: #{tpu_custom_call.1}
  #allocation0 [shape = 'u32[]', space=smem, size = 0x4, offset = 0x4, fixed_abs, tag = 'smem constant byte address 0x4 - core index']
  #allocation1 [shape = 'u32[72,128]{1,0:T(1,128)}', space=vmem, size = 0x9000, scoped, tag = 'internal scratch']
  %s0 = inlined_call_operand.hbm [shape: f32[2,8,128], index: 0, kind: input, shape index: {}]
  %s1 = inlined_call_operand.hbm [shape: f32[2,8,128], index: 1, kind: input, shape index: {}]
  %s2 = inlined_call_operand.hbm [shape: f32[2,1,8,128], index: 2, kind: output, shape index: {0}]
  %s3 = inlined_call_operand.hbm [shape: f32[2,1,8,128], index: 3, kind: output, shape index: {1}]
  %s4 = inlined_call_operand.hbm [shape: f32[2,1,8,128], index: 4, kind: output, shape index: {2}]
  %5 = xla_tuple %s2, %s3, %s4
  %s6 = sld [smem:[#allocation0]]
  $region69: #{tpu_custom_call.1} parent=0
    _
  %s8 = ssub.s32 1, %s6
  %s9 = scalar_select 0, %s8, %s6
  $region1: #{tpu_custom_call.1} parent=0
    #allocation2 [shape = 'u8[8192]{0}', space=vmem, size = 0x2000, scoped, tag = 'input window, operand 0']
    #allocation3 [shape = 's32[2]{0}', space=sflag, size = 0x8, scoped, tag = 'scoped memory for tpu_custom_call.1']
    #allocation4 [shape = 's32[2]{0}', space=sflag, size = 0x8, scoped, tag = 'scoped memory for tpu_custom_call.1']
    #allocation5 [shape = 'u8[8192]{0}', space=vmem, size = 0x2000, scoped, tag = 'input window, operand 1']
    #allocation6 [shape = 's32[2]{0}', space=sflag, size = 0x8, scoped, tag = 'scoped memory for tpu_custom_call.1']
    #allocation7 [shape = 'u8[8192]{0}', space=vmem, size = 0x2000, scoped, tag = 'output window, operand 0']
    #allocation8 [shape = 'u8[8192]{0}', space=vmem, size = 0x2000, scoped, tag = 'output window, operand 1']
    #allocation9 [shape = 's32[2]{0}', space=sflag, size = 0x8, scoped, tag = 'scoped memory for tpu_custom_call.1']
    #allocation10 [shape = 'u8[8192]{0}', space=vmem, size = 0x2000, scoped, tag = 'output window, operand 2']
    %10 = vsyncpa [#allocation3], 0
    %s11 = scalar_lea.sflag [#allocation3], 1
    %12 = vsyncpa %s11, 0
    %13 = vsyncpa [#allocation6], 0
    %s14 = scalar_lea.sflag [#allocation6], 1
    %15 = vsyncpa %s14, 0
    %16 = vsyncpa [#allocation4], 0
    %s17 = scalar_lea.sflag [#allocation4], 1
    %18 = vsyncpa %s17, 0
    %19 = vsyncpa [#allocation9], 0
    %s20 = scalar_lea.sflag [#allocation9], 1
    %21 = vsyncpa %s20, 0
    loop: start=0, step=1, limit=4
    $region2: #{tpu_custom_call.1} parent=1 // loop_pre_header
      _
    $region3: #{tpu_custom_call.1} parent=1 // loop_header
      %s23 = sphi 0, %s27
      %p24 = scmp.ge.s32.totalorder %s23, 4
      %s30 = sphi 0, %s49
      %s31 = sphi 0, %s45
      %s32 = sphi 0, %s41
      %s33 = sphi 0, %s30
      %s34 = sphi 0, %s31
      %s35 = sphi 0, %s32
      %s36 = sphi 0, %s33
      %s37 = sphi 0, %s34
      %s38 = sphi 0, %s35
      %s60 = sphi 0, %s62
      %s63 = sphi 0, %s60
      %s64 = sphi 0, %s63
      %s80 = sphi 0, %s64
      %s94 = sphi 0, %s96
      %s97 = sphi 0, %s94
      %s98 = sphi 0, %s97
      %s114 = sphi 0, %s98
      %s122 = sphi 0, %s124
      %s125 = sphi 0, %s122
      %s126 = sphi 0, %s125
      %s142 = sphi 0, %s126
      %s150 = sphi 0, %s152
      %s153 = sphi 0, %s150
      %s154 = sphi 0, %s153
      %s170 = sphi 0, %s154
      %s178 = sphi 0, %s180
      %s181 = sphi 0, %s178
      %s182 = sphi 0, %s181
      %s198 = sphi 0, %s182
    $region4: #{tpu_custom_call.1} parent=1 // loop_header_branch
      %26 = sbr.rel (%p24) target = $region8
    $region5: #{tpu_custom_call.1} parent=1 // loop_body
      %s28 = ssub.s32 %s23, 1
      %s29 = ssub.s32 %s23, 2
      %s39 = sadd.s32 1, %s32
      %p40 = scmp.ge.s32.totalorder %s39, 1
      %s41 = scalar_select %p40, 0, %s39
      %s42 = sadd.s32 1, %s31
      %s43 = scalar_select %p40, %s42, %s31
      %p44 = scmp.ge.s32.totalorder %s43, 1
      %s45 = scalar_select %p44, 0, %s43
      %s46 = sadd.s32 1, %s30
      %s47 = scalar_select %p44, %s46, %s30
      %p48 = scmp.ge.s32.totalorder %s47, 2
      %s49 = scalar_select %p48, 0, %s47
      %s50 = sadd.s32 %s31, %s32
      %p51 = scmp.lt.s32.totalorder %s50, 0
      %s52 = scalar_select %p51, %s50, 0
      %s53 = sadd.s32 %s45, %s41
      %p54 = scmp.lt.s32.totalorder %s53, 0
      %s55 = scalar_select %p54, %s53, 0
      %s56 = ssub.s32 %s30, %s49
      %s57 = ssub.s32 %s52, %s55
      %s58 = sor.u32 %s56, %s57
      %p59 = scmp.eq.s32.totalorder %s58, 0
      %s61 = sadd.s32 %s60, 1
      %s62 = scalar_select %p59, %s60, %s61
      %p65 = pneg %p59
      %p66 = scmp.eq.s32.totalorder %s23, 1
      %p67 = por %p65, %p66
      %p68 = scmp.ne.s32.totalorder %s60, %s63
      %p69 = scmp.eq.s32.totalorder %s23, 0
      %p70 = por %p68, %p69
      %p71 = scmp.ne.s32.totalorder %s60, %s63
      %p72 = scmp.eq.s32.totalorder %s28, 1
      %p73 = por %p71, %p72
      %p74 = scmp.ne.s32.totalorder %s63, %s64
      %p75 = scmp.eq.s32.totalorder %s28, 0
      %p76 = por %p74, %p75
      %p77 = scmp.ne.s32.totalorder %s63, %s64
      %p78 = scmp.eq.s32.totalorder %s29, 1
      %p79 = por %p77, %p78
      %p81 = scmp.ne.s32.totalorder %s64, %s80
      %p82 = scmp.eq.s32.totalorder %s29, 0
      %p83 = por %p81, %p82
      %s84 = sadd.s32 %s31, %s32
      %p85 = scmp.lt.s32.totalorder %s84, 0
      %s86 = scalar_select %p85, %s84, 0
      %s87 = sadd.s32 %s45, %s41
      %p88 = scmp.lt.s32.totalorder %s87, 0
      %s89 = scalar_select %p88, %s87, 0
      %s90 = ssub.s32 %s30, %s49
      %s91 = ssub.s32 %s86, %s89
      %s92 = sor.u32 %s90, %s91
      %p93 = scmp.eq.s32.totalorder %s92, 0
      %s95 = sadd.s32 %s94, 1
      %s96 = scalar_select %p93, %s94, %s95
      %p99 = pneg %p93
      %p100 = scmp.eq.s32.totalorder %s23, 1
      %p101 = por %p99, %p100
      %p102 = scmp.ne.s32.totalorder %s94, %s97
      %p103 = scmp.eq.s32.totalorder %s23, 0
      %p104 = por %p102, %p103
      %p105 = scmp.ne.s32.totalorder %s94, %s97
      %p106 = scmp.eq.s32.totalorder %s28, 1
      %p107 = por %p105, %p106
      %p108 = scmp.ne.s32.totalorder %s97, %s98
      %p109 = scmp.eq.s32.totalorder %s28, 0
      %p110 = por %p108, %p109
      %p111 = scmp.ne.s32.totalorder %s97, %s98
      %p112 = scmp.eq.s32.totalorder %s29, 1
      %p113 = por %p111, %p112
      %p115 = scmp.ne.s32.totalorder %s98, %s114
      %p116 = scmp.eq.s32.totalorder %s29, 0
      %p117 = por %p115, %p116
      %s118 = ssub.s32 %s30, %s49
      %s119 = ssub.s32 %s31, %s45
      %s120 = sor.u32 %s118, %s119
      %p121 = scmp.eq.s32.totalorder %s120, 0
      %s123 = sadd.s32 %s122, 1
      %s124 = scalar_select %p121, %s122, %s123
      %p127 = pneg %p121
      %p128 = scmp.eq.s32.totalorder %s23, 1
      %p129 = por %p127, %p128
      %p130 = scmp.ne.s32.totalorder %s122, %s125
      %p131 = scmp.eq.s32.totalorder %s23, 0
      %p132 = por %p130, %p131
      %p133 = scmp.ne.s32.totalorder %s122, %s125
      %p134 = scmp.eq.s32.totalorder %s28, 1
      %p135 = por %p133, %p134
      %p136 = scmp.ne.s32.totalorder %s125, %s126
      %p137 = scmp.eq.s32.totalorder %s28, 0
      %p138 = por %p136, %p137
      %p139 = scmp.ne.s32.totalorder %s125, %s126
      %p140 = scmp.eq.s32.totalorder %s29, 1
      %p141 = por %p139, %p140
      %p143 = scmp.ne.s32.totalorder %s126, %s142
      %p144 = scmp.eq.s32.totalorder %s29, 0
      %p145 = por %p143, %p144
      %s146 = ssub.s32 %s30, %s49
      %s147 = ssub.s32 %s31, %s45
      %s148 = sor.u32 %s146, %s147
      %p149 = scmp.eq.s32.totalorder %s148, 0
      %s151 = sadd.s32 %s150, 1
      %s152 = scalar_select %p149, %s150, %s151
      %p155 = pneg %p149
      %p156 = scmp.eq.s32.totalorder %s23, 1
      %p157 = por %p155, %p156
      %p158 = scmp.ne.s32.totalorder %s150, %s153
      %p159 = scmp.eq.s32.totalorder %s23, 0
      %p160 = por %p158, %p159
      %p161 = scmp.ne.s32.totalorder %s150, %s153
      %p162 = scmp.eq.s32.totalorder %s28, 1
      %p163 = por %p161, %p162
      %p164 = scmp.ne.s32.totalorder %s153, %s154
      %p165 = scmp.eq.s32.totalorder %s28, 0
      %p166 = por %p164, %p165
      %p167 = scmp.ne.s32.totalorder %s153, %s154
      %p168 = scmp.eq.s32.totalorder %s29, 1
      %p169 = por %p167, %p168
      %p171 = scmp.ne.s32.totalorder %s154, %s170
      %p172 = scmp.eq.s32.totalorder %s29, 0
      %p173 = por %p171, %p172
      %s174 = ssub.s32 %s30, %s49
      %s175 = ssub.s32 %s31, %s45
      %s176 = sor.u32 %s174, %s175
      %p177 = scmp.eq.s32.totalorder %s176, 0
      %s179 = sadd.s32 %s178, 1
      %s180 = scalar_select %p177, %s178, %s179
      %p183 = pneg %p177
      %p184 = scmp.eq.s32.totalorder %s23, 1
      %p185 = por %p183, %p184
      %p186 = scmp.ne.s32.totalorder %s178, %s181
      %p187 = scmp.eq.s32.totalorder %s23, 0
      %p188 = por %p186, %p187
      %p189 = scmp.ne.s32.totalorder %s178, %s181
      %p190 = scmp.eq.s32.totalorder %s28, 1
      %p191 = por %p189, %p190
      %p192 = scmp.ne.s32.totalorder %s181, %s182
      %p193 = scmp.eq.s32.totalorder %s28, 0
      %p194 = por %p192, %p193
      %p195 = scmp.ne.s32.totalorder %s181, %s182
      %p196 = scmp.eq.s32.totalorder %s29, 1
      %p197 = por %p195, %p196
      %p199 = scmp.ne.s32.totalorder %s182, %s198
      %p200 = scmp.eq.s32.totalorder %s29, 0
      %p201 = por %p199, %p200
      %p202 = scmp.le.s32.totalorder 1, %s23
      %p203 = scmp.lt.s32.totalorder %s23, 3
      %p204 = pnand %p202, %p203
      %p205 = pneg %p204
      // Predicated region
      $region9: #{tpu_custom_call.1} parent=5 // pred_check
        _
      $region10: #{tpu_custom_call.1} parent=5 // pred_check_branch
        %207 = sbr.rel (%p204) target = $region12
      $region11: #{tpu_custom_call.1} parent=5 // pred_region
        %s208 = ssub.s32 %s23, 1
      $region12: #{tpu_custom_call.1} parent=5 // pred_fallthru
        _
      %p209 = scmp.lt.s32.totalorder %s23, 2
      // Predicated region
      $region13: #{tpu_custom_call.1} parent=5 // pred_check
        %p210 = pneg %p209
      $region14: #{tpu_custom_call.1} parent=5 // pred_check_branch
        %212 = sbr.rel (%p210) target = $region16
      $region15: #{tpu_custom_call.1} parent=5 // pred_region
        // Predicated region
        $region17: #{tpu_custom_call.1} parent=15 // pred_check
          %p213 = pneg %p70
        $region18: #{tpu_custom_call.1} parent=15 // pred_check_branch
          %215 = sbr.rel (%p213) target = $region20
        $region19: #{tpu_custom_call.1} parent=15 // pred_region
          %s216 = sand.u32 %s60, 1
          %s217 = scalar_lea.sflag [#allocation3], %s216
          %s218 = sand.u32 %s60, 1
          %s219 = smul.addr %s218, 8
          %s220 = scalar_lea.vmem [#allocation2], %s219
          %s221 = sadd.s32 %s31, %s32
          %p222 = scmp.lt.s32.totalorder %s221, 0
          %s223 = scalar_select %p222, %s221, 0
          %225 = vsyncadd %s217, 0
          %s226 = sadd.s32 %s223, %s30
          %s227 = smul.addr %s226, 8
          %s228 = scalar_lea.hbm %s0, %s227
          %s230 = sshll.u32 %s228, 4
          %s231 = int_to_ptr.hbm [resolvable:$true] %s230
          %s232 = sshll.u32 %s220, 4
          %s233 = int_to_ptr.vmem [resolvable:$true] %s232
          %235 = dma.hbm_to_vmem [thread:$0]  %s231, 128, %s233, %s217
        $region20: #{tpu_custom_call.1} parent=15 // pred_fallthru
          _
        // Predicated region
        $region21: #{tpu_custom_call.1} parent=15 // pred_check
          %p236 = pneg %p104
        $region22: #{tpu_custom_call.1} parent=15 // pred_check_branch
          %238 = sbr.rel (%p236) target = $region24
        $region23: #{tpu_custom_call.1} parent=15 // pred_region
          %s239 = sand.u32 %s94, 1
          %s240 = scalar_lea.sflag [#allocation6], %s239
          %s241 = sand.u32 %s94, 1
          %s242 = smul.addr %s241, 8
          %s243 = scalar_lea.vmem [#allocation5], %s242
          %s244 = sadd.s32 %s31, %s32
          %p245 = scmp.lt.s32.totalorder %s244, 0
          %s246 = scalar_select %p245, %s244, 0
          %248 = vsyncadd %s240, 0
          %s249 = sadd.s32 %s246, %s30
          %s250 = smul.addr %s249, 8
          %s251 = scalar_lea.hbm %s1, %s250
          %s253 = sshll.u32 %s251, 4
          %s254 = int_to_ptr.hbm [resolvable:$true] %s253
          %s255 = sshll.u32 %s243, 4
          %s256 = int_to_ptr.vmem [resolvable:$true] %s255
          %258 = dma.hbm_to_vmem [thread:$0]  %s254, 128, %s256, %s240
        $region24: #{tpu_custom_call.1} parent=15 // pred_fallthru
          _
      $region16: #{tpu_custom_call.1} parent=5 // pred_fallthru
        _
      %p259 = scmp.le.s32.totalorder 1, %s23
      %p260 = scmp.lt.s32.totalorder %s23, 3
      %p261 = pnand %p259, %p260
      %p262 = pneg %p261
      // Predicated region
      $region25: #{tpu_custom_call.1} parent=5 // pred_check
        _
      $region26: #{tpu_custom_call.1} parent=5 // pred_check_branch
        %264 = sbr.rel (%p261) target = $region28
      $region27: #{tpu_custom_call.1} parent=5 // pred_region
        %s265 = ssub.s32 %s23, 1
        %s266 = sand.u32 %s63, 1
        %s267 = scalar_lea.sflag [#allocation3], %s266
        %s268 = sand.u32 %s63, 1
        %s269 = smul.addr %s268, 8
        %s270 = scalar_lea.vmem [#allocation2], %s269
        // Predicated region
        $region29: #{tpu_custom_call.1} parent=27 // pred_check
          %p271 = pneg %p76
        $region30: #{tpu_custom_call.1} parent=27 // pred_check_branch
          %273 = sbr.rel (%p271) target = $region32
        $region31: #{tpu_custom_call.1} parent=27 // pred_region
          %275 = dma.done %s267, 128
        $region32: #{tpu_custom_call.1} parent=27 // pred_fallthru
          _
        %s276 = sand.u32 %s97, 1
        %s277 = scalar_lea.sflag [#allocation6], %s276
        %s278 = sand.u32 %s97, 1
        %s279 = smul.addr %s278, 8
        %s280 = scalar_lea.vmem [#allocation5], %s279
        // Predicated region
        $region33: #{tpu_custom_call.1} parent=27 // pred_check
          %p281 = pneg %p110
        $region34: #{tpu_custom_call.1} parent=27 // pred_check_branch
          %283 = sbr.rel (%p281) target = $region36
        $region35: #{tpu_custom_call.1} parent=27 // pred_region
          %285 = dma.done %s277, 128
        $region36: #{tpu_custom_call.1} parent=27 // pred_fallthru
          _
        %s286 = sand.u32 %s63, 1
        %s287 = scalar_lea.sflag [#allocation3], %s286
        %s288 = sand.u32 %s63, 1
        %s289 = smul.addr %s288, 8
        %s290 = scalar_lea.vmem [#allocation2], %s289
        %p291 = pneg %p76
        %p292 = pneg %p73
        %s293 = sand.u32 %s97, 1
        %s294 = scalar_lea.sflag [#allocation6], %s293
        %s295 = sand.u32 %s97, 1
        %s296 = smul.addr %s295, 8
        %s297 = scalar_lea.vmem [#allocation5], %s296
        %p298 = pneg %p110
        %p299 = pneg %p107
        %p300 = pneg %p138
        %p301 = pneg %p135
        %s302 = sand.u32 %s125, 1
        %s303 = scalar_lea.sflag [#allocation4], %s302
        %s304 = sand.u32 %s125, 1
        %s305 = smul.addr %s304, 8
        %s306 = scalar_lea.vmem [#allocation7], %s305
        %p307 = pneg %p166
        %p308 = pneg %p163
        %s309 = sand.u32 %s28, 1
        %s310 = scalar_lea.sflag [#allocation9], %s309
        %s311 = sand.u32 %s153, 1
        %s312 = smul.addr %s311, 8
        %s313 = scalar_lea.vmem [#allocation8], %s312
        %p314 = pneg %p194
        %p315 = pneg %p191
        %s316 = sand.u32 %s28, 1
        %s317 = scalar_lea.sflag [#allocation9], %s316
        %s318 = sand.u32 %s181, 1
        %s319 = smul.addr %s318, 8
        %s320 = scalar_lea.vmem [#allocation10], %s319
        %s321 = sadd.s32 %s34, %s35
        %p322 = scmp.lt.s32.totalorder %s321, 0
        %s323 = scalar_select %p322, %s321, 0
        %s324 = sadd.s32 %s34, %s35
        %p325 = scmp.lt.s32.totalorder %s324, 0
        %s326 = scalar_select %p325, %s324, 0
        %p327 = scmp.eq.s32.totalorder %s35, 0
        // Predicated region
        $region37: #{tpu_custom_call.1} parent=27 // pred_check
          %p328 = pneg %p327
        $region38: #{tpu_custom_call.1} parent=27 // pred_check_branch
          %330 = sbr.rel (%p328) target = $region40
        $region39: #{tpu_custom_call.1} parent=27 // pred_region
          %331 = vst [vmem:[%s306] sm:$0xff] 0.0
          %332 = vst [vmem:[%s313] sm:$0xff] 0.0
          %333 = vst [vmem:[%s320] sm:$0xff] 0.0
        $region40: #{tpu_custom_call.1} parent=27 // pred_fallthru
          _
        %v334 = vld [vmem:[%s270] sm:$0xff]
        %v335 = vld [vmem:[%s280] sm:$0xff]
        %v336 = vmul.f32 %v334, 0.5
        %v337 = vtanh.pop %v336
        %v338 = vmul.f32 %v337, %v335
        %v339 = vadd.f32 %v337, 0.0
        %v340 = vadd.f32 %v338, 0.0
        %v341 = vadd.f32 %v335, 0.0
        %v342 = vld [vmem:[%s306] sm:$0xff]
        %v343 = vadd.f32 %v342, %v339
        %344 = vst [vmem:[%s306] sm:$0xff] %v343
        %v345 = vld [vmem:[%s313] sm:$0xff]
        %v346 = vadd.f32 %v345, %v340
        %347 = vst [vmem:[%s313] sm:$0xff] %v346
        %v348 = vld [vmem:[%s320] sm:$0xff]
        %v349 = vadd.f32 %v348, %v341
        %350 = vst [vmem:[%s320] sm:$0xff] %v349
        %s351 = sand.u32 %s125, 1
        %s352 = scalar_lea.sflag [#allocation4], %s351
        %s353 = sand.u32 %s125, 1
        %s354 = smul.addr %s353, 8
        %s355 = scalar_lea.vmem [#allocation7], %s354
        %s356 = sand.u32 %s28, 1
        %s357 = scalar_lea.sflag [#allocation9], %s356
        %s358 = sand.u32 %s153, 1
        %s359 = smul.addr %s358, 8
        %s360 = scalar_lea.vmem [#allocation8], %s359
        %s361 = sand.u32 %s28, 1
        %s362 = scalar_lea.sflag [#allocation9], %s361
        %s363 = sand.u32 %s181, 1
        %s364 = smul.addr %s363, 8
        %s365 = scalar_lea.vmem [#allocation10], %s364
        // Predicated region
        $region41: #{tpu_custom_call.1} parent=27 // pred_check
          %p366 = pneg %p135
        $region42: #{tpu_custom_call.1} parent=27 // pred_check_branch
          %368 = sbr.rel (%p366) target = $region44
        $region43: #{tpu_custom_call.1} parent=27 // pred_region
          %370 = vsyncadd %s352, 0
          %s371 = sadd.s32 %s34, %s33
          %s372 = smul.addr %s371, 8
          %s373 = scalar_lea.hbm %s2, %s372
          %s375 = sshll.u32 %s355, 4
          %s376 = int_to_ptr.vmem [resolvable:$true] %s375
          %s377 = sshll.u32 %s373, 4
          %s378 = int_to_ptr.hbm [resolvable:$true] %s377
          %380 = dma.vmem_to_hbm [thread:$0]  %s376, 128, %s378, %s352
        $region44: #{tpu_custom_call.1} parent=27 // pred_fallthru
          _
        // Predicated region
        $region45: #{tpu_custom_call.1} parent=27 // pred_check
          %p381 = pneg %p163
        $region46: #{tpu_custom_call.1} parent=27 // pred_check_branch
          %383 = sbr.rel (%p381) target = $region48
        $region47: #{tpu_custom_call.1} parent=27 // pred_region
          %385 = vsyncadd %s357, 0
          %s386 = sadd.s32 %s34, %s33
          %s387 = smul.addr %s386, 8
          %s388 = scalar_lea.hbm %s3, %s387
          %s390 = sshll.u32 %s360, 4
          %s391 = int_to_ptr.vmem [resolvable:$true] %s390
          %s392 = sshll.u32 %s388, 4
          %s393 = int_to_ptr.hbm [resolvable:$true] %s392
          %395 = dma.vmem_to_hbm [thread:$0]  %s391, 128, %s393, %s357
        $region48: #{tpu_custom_call.1} parent=27 // pred_fallthru
          _
        // Predicated region
        $region49: #{tpu_custom_call.1} parent=27 // pred_check
          %p396 = pneg %p191
        $region50: #{tpu_custom_call.1} parent=27 // pred_check_branch
          %398 = sbr.rel (%p396) target = $region52
        $region51: #{tpu_custom_call.1} parent=27 // pred_region
          %400 = vsyncadd %s362, 0
          %s401 = sadd.s32 %s34, %s33
          %s402 = smul.addr %s401, 8
          %s403 = scalar_lea.hbm %s4, %s402
          %s405 = sshll.u32 %s365, 4
          %s406 = int_to_ptr.vmem [resolvable:$true] %s405
          %s407 = sshll.u32 %s403, 4
          %s408 = int_to_ptr.hbm [resolvable:$true] %s407
          %410 = dma.vmem_to_hbm [thread:$0]  %s406, 128, %s408, %s362
        $region52: #{tpu_custom_call.1} parent=27 // pred_fallthru
          _
      $region28: #{tpu_custom_call.1} parent=5 // pred_fallthru
        _
      %p411 = scmp.le.s32.totalorder 2, %s23
      // Predicated region
      $region53: #{tpu_custom_call.1} parent=5 // pred_check
        %p412 = pneg %p411
      $region54: #{tpu_custom_call.1} parent=5 // pred_check_branch
        %414 = sbr.rel (%p412) target = $region56
      $region55: #{tpu_custom_call.1} parent=5 // pred_region
        %s415 = ssub.s32 %s23, 2
        // Predicated region
        $region57: #{tpu_custom_call.1} parent=55 // pred_check
          %p416 = pneg %p141
        $region58: #{tpu_custom_call.1} parent=55 // pred_check_branch
          %418 = sbr.rel (%p416) target = $region60
        $region59: #{tpu_custom_call.1} parent=55 // pred_region
          %s419 = sand.u32 %s126, 1
          %s420 = scalar_lea.sflag [#allocation4], %s419
          %s421 = sand.u32 %s126, 1
          %s422 = smul.addr %s421, 8
          %s423 = scalar_lea.vmem [#allocation7], %s422
          %425 = dma.done %s420, 128
        $region60: #{tpu_custom_call.1} parent=55 // pred_fallthru
          _
        // Predicated region
        $region61: #{tpu_custom_call.1} parent=55 // pred_check
          %p426 = pneg %p169
        $region62: #{tpu_custom_call.1} parent=55 // pred_check_branch
          %428 = sbr.rel (%p426) target = $region64
        $region63: #{tpu_custom_call.1} parent=55 // pred_region
          %s429 = sand.u32 %s29, 1
          %s430 = scalar_lea.sflag [#allocation9], %s429
          %s431 = sand.u32 %s154, 1
          %s432 = smul.addr %s431, 8
          %s433 = scalar_lea.vmem [#allocation8], %s432
          %435 = dma.done %s430, 128
        $region64: #{tpu_custom_call.1} parent=55 // pred_fallthru
          _
        // Predicated region
        $region65: #{tpu_custom_call.1} parent=55 // pred_check
          %p436 = pneg %p197
        $region66: #{tpu_custom_call.1} parent=55 // pred_check_branch
          %438 = sbr.rel (%p436) target = $region68
        $region67: #{tpu_custom_call.1} parent=55 // pred_region
          %s439 = sand.u32 %s29, 1
          %s440 = scalar_lea.sflag [#allocation9], %s439
          %s441 = sand.u32 %s182, 1
          %s442 = smul.addr %s441, 8
          %s443 = scalar_lea.vmem [#allocation10], %s442
          %445 = dma.done %s440, 128
        $region68: #{tpu_custom_call.1} parent=55 // pred_fallthru
          _
      $region56: #{tpu_custom_call.1} parent=5 // pred_fallthru
        _
    $region6: #{tpu_custom_call.1} parent=1 // loop_footer
      %s27 = sadd.s32 1, %s23
    $region7: #{tpu_custom_call.1} parent=1 // loop_footer_branch
      %22 = sbr.rel target = $region3
    $region8: #{tpu_custom_call.1} parent=1 // loop_exit
      _
    %446 = vsyncpa [#allocation3], 1
    %s447 = scalar_lea.sflag [#allocation3], 1
    %448 = vsyncpa %s447, 1
    %449 = vsyncpa [#allocation6], 1
    %s450 = scalar_lea.sflag [#allocation6], 1
    %451 = vsyncpa %s450, 1
    %452 = vsyncpa [#allocation4], 1
    %s453 = scalar_lea.sflag [#allocation4], 1
    %454 = vsyncpa %s453, 1
    %455 = vsyncpa [#allocation9], 1
    %s456 = scalar_lea.sflag [#allocation9], 1
    %457 = vsyncpa %s456, 1

</llo_original>
